<compile_context>
chip_gen: v7x
topology: tpu7x:2x2x1
jax: 0.10.0
libtpu: 0.0.40
codegen_flags: <defaults>
</compile_context>

<pallas_src>
import math
from functools import partial

import jax
import jax.numpy as jnp
from jax.experimental import pallas as pl
from jax.experimental.pallas import tpu as pltpu


def _round_up(v: int, m: int) -> int:
    return (v + m - 1) // m * m


# --------------------------------------------------------------------------
# Kernel variants.  Common ref layout:
#   x_ref  : (1, c_in_p, t_tile)   main input tile (padded-x coordinates)
#   xh_ref : (1, c_in_p, halo_r)   right halo = lanes right after this tile
#   w_ref  : (c_out_blk, K*c_in_p) weight block, contraction idx = k*c_in_p + c
#   b_ref  : (c_out_blk, 1)        bias (f32)
#   o_ref  : (1, c_out_blk, t_tile)
# --------------------------------------------------------------------------

def _kernel_vpu(x_ref, xh_ref, w_ref, b_ref, o_ref, *,
                K, dilation, t_tile, c_in_p, c_in):
    # Tiny channel counts: broadcast-FMA on the VPU, skip the MXU entirely.
    x = x_ref[0]                                   # (c_in_p, t_tile)
    xh = xh_ref[0]                                 # (c_in_p, halo_r)
    c_out_blk = o_ref.shape[1]
    acc = jnp.zeros((c_out_blk, t_tile), jnp.float32)
    for k in range(K):                             # static unroll over taps
        off = k * dilation
        if off == 0:
            win = x
        elif off < t_tile:
            win = jnp.concatenate([x[:, off:], xh[:, :off]], axis=1)
        else:                                      # off == t_tile (rare edge)
            win = xh[:, :t_tile]
        win = win.astype(jnp.float32)
        for ci in range(c_in):                     # only real channels
            idx = k * c_in_p + ci
            w_col = w_ref[:, idx:idx + 1].astype(jnp.float32)   # (c_out_blk, 1)
            acc = acc + w_col * win[ci:ci + 1, :]                # outer-product FMA
    o_ref[...] = (acc + b_ref[...])[None].astype(o_ref.dtype)


def _kernel_im2col(x_ref, xh_ref, w_ref, b_ref, o_ref, col_ref, *,
                   K, dilation, t_tile, c_in_p):
    # col_ref: (K*c_in_p, t_tile) VMEM scratch.  Built directly from the input
    # refs (no intermediate window staging); single MXU matmul afterwards.
    for k in range(K):
        off = k * dilation
        r0 = k * c_in_p
        if off == 0:
            col_ref[r0:r0 + c_in_p, :] = x_ref[0]
        elif off < t_tile:
            col_ref[r0:r0 + c_in_p, :t_tile - off] = x_ref[0, :, off:]
            col_ref[r0:r0 + c_in_p, t_tile - off:] = xh_ref[0, :, :off]
        else:                                      # off == t_tile (rare edge)
            col_ref[r0:r0 + c_in_p, :] = xh_ref[0, :, :t_tile]
    y = jnp.dot(w_ref[...], col_ref[...], preferred_element_type=jnp.float32)
    o_ref[...] = (y + b_ref[...])[None].astype(o_ref.dtype)


def _kernel_direct(x_ref, xh_ref, w_ref, b_ref, o_ref, acc_ref, *,
                   K, dilation, t_tile, c_in_p):
    # c_in_p already fills the MXU contraction: K matmuls accumulated into an
    # f32 scratch, no im2col materialization.
    acc_ref[...] = jnp.zeros_like(acc_ref)
    for k in range(K):
        off = k * dilation
        w_k = w_ref[:, k * c_in_p:(k + 1) * c_in_p]          # (c_out_blk, c_in_p)
        if off == 0:
            acc_ref[...] += jnp.dot(w_k, x_ref[0],
                                    preferred_element_type=jnp.float32)
        elif off < t_tile:
            acc_ref[:, :t_tile - off] += jnp.dot(
                w_k, x_ref[0, :, off:], preferred_element_type=jnp.float32)
            acc_ref[:, t_tile - off:] += jnp.dot(
                w_k, xh_ref[0, :, :off], preferred_element_type=jnp.float32)
        else:                                      # off == t_tile (rare edge)
            acc_ref[...] += jnp.dot(w_k, xh_ref[0, :, :t_tile],
                                    preferred_element_type=jnp.float32)
    o_ref[...] = (acc_ref[...] + b_ref[...])[None].astype(o_ref.dtype)


# --------------------------------------------------------------------------
# Wrapper
# --------------------------------------------------------------------------

def noncausal_conv1d(x, weight, bias=None, *, stride=1, padding=-1, dilation=1,
                     groups=1, compute_dtype=None, base_t_tile=1024):
    """x: (B, C_in, T) -> (B, C_out, T_out); same semantics as nn.Conv1d."""
    B, C_in, T = x.shape
    C_out, C_in_w, K = weight.shape
    assert groups == 1 and C_in == C_in_w, "groups != 1 not supported"
    assert stride == 1, "stride != 1 not supported"
    if padding < 0:
        padding = (K - 1) // 2 * dilation

    out_dtype = x.dtype
    if compute_dtype is None:
        # NOTE: on v6e/v7x pass compute_dtype=jnp.bfloat16 (accumulation stays
        # f32) to halve HBM/VMEM traffic if the accuracy budget allows.
        compute_dtype = x.dtype
    itemsize = jnp.dtype(compute_dtype).itemsize
    out_size = jnp.dtype(out_dtype).itemsize
    sublane = 8 * max(1, 4 // itemsize)             # 8 for f32, 16 for bf16
    c_in_p = _round_up(C_in, sublane)

    halo = dilation * (K - 1)
    halo_r = max(128, _round_up(halo, 128))         # lane-aligned halo window
    T_out = T + 2 * padding - halo
    assert T_out > 0, "sequence too short for this kernel_size/dilation"

    # --- static variant selection ---
    if C_out * K * C_in <= 4096 and K * C_in <= 1024:
        variant = "vpu"                             # MXU would be <1% utilized
    elif c_in_p >= 256:
        variant = "direct"                          # each tap fills the MXU
    else:
        variant = "im2col"

    # --- generation-aware VMEM budget ---
    try:
        vmem_cap = int(pltpu.get_tpu_info().vmem_capacity_bytes)
    except Exception:
        vmem_cap = 64 * 2**20                       # conservative (v7x per-TC)
    budget = min(32 * 2**20, int(vmem_cap * 0.35))

    c_out_blk = C_out if C_out <= 256 else 256      # C_out tiling bound

    def vmem_bytes(tt, cob):
        b = 2 * c_in_p * tt * itemsize              # x tile (double buffered)
        b += 2 * c_in_p * halo_r * itemsize         # halo tile (double buffered)
        b += 2 * cob * tt * out_size                # output tile (double buffered)
        b += 2 * cob * K * c_in_p * itemsize        # weight block (pipeline bufs)
        b += 2 * cob * 4                            # bias
        if variant == "im2col":
            b += K * c_in_p * tt * itemsize         # im2col scratch
        b += cob * tt * 4                           # f32 acc / matmul result
        return b

    t_tile = _round_up(min(max(T_out, 1), base_t_tile), 128)
    t_tile = max(_round_up(t_tile, halo_r), halo_r)
    while vmem_bytes(t_tile, c_out_blk) > budget:
        if t_tile > halo_r:
            t_tile = max(halo_r, _round_up(t_tile // 2, halo_r))
        elif c_out_blk > 8:
            c_out_blk = max(8, _round_up(c_out_blk // 2, 8))
        else:
            break

    n_co = (C_out + c_out_blk - 1) // c_out_blk
    c_out_pad = n_co * c_out_blk
    vmem_limit = int(min(vmem_cap * 3 // 4,
                         max(16 * 2**20, 2 * vmem_bytes(t_tile, c_out_blk))))

    nt = (T_out + t_tile - 1) // t_tile
    T_out_pad = nt * t_tile
    L_pad = T_out_pad + halo_r                      # padded time extent of x
    halo_stride = t_tile // halo_r

    # One combined pad: conv zero-padding + channel pad + tile rounding.
    x_c = x.astype(compute_dtype)
    x_pad = jnp.pad(x_c, ((0, 0), (0, c_in_p - C_in),
                          (padding, L_pad - T - padding)))

    # (C_out, C_in, K) -> (C_out_pad, K, C_in_p) -> (C_out_pad, K*C_in_p)
    w_t = jnp.transpose(weight.astype(compute_dtype), (0, 2, 1))
    w_t = jnp.pad(w_t, ((0, c_out_pad - C_out), (0, 0), (0, c_in_p - C_in)))
    w2 = w_t.reshape(c_out_pad, K * c_in_p)

    if bias is None:
        bias = jnp.zeros((C_out,), jnp.float32)
    b2 = jnp.pad(bias.astype(jnp.float32), (0, c_out_pad - C_out)).reshape(c_out_pad, 1)

    common = dict(K=K, dilation=dilation, t_tile=t_tile, c_in_p=c_in_p)
    if variant == "vpu":
        kernel = partial(_kernel_vpu, c_in=C_in, **common)
        scratch = []
    elif variant == "im2col":
        kernel = partial(_kernel_im2col, **common)
        scratch = [pltpu.VMEM((K * c_in_p, t_tile), compute_dtype)]
    else:
        kernel = partial(_kernel_direct, **common)
        scratch = [pltpu.VMEM((c_out_blk, t_tile), jnp.float32)]

    out_full = pl.pallas_call(
        kernel,
        out_shape=jax.ShapeDtypeStruct((B, c_out_pad, T_out_pad), out_dtype),
        grid=(B, n_co, nt),
        in_specs=[
            pl.BlockSpec((1, c_in_p, t_tile), lambda b, co, t: (b, 0, t)),
            pl.BlockSpec((1, c_in_p, halo_r),
                         lambda b, co, t: (b, 0, (t + 1) * halo_stride)),
            pl.BlockSpec((c_out_blk, K * c_in_p), lambda b, co, t: (co, 0)),
            pl.BlockSpec((c_out_blk, 1), lambda b, co, t: (co, 0)),
        ],
        out_specs=pl.BlockSpec((1, c_out_blk, t_tile), lambda b, co, t: (b, co, t)),
        scratch_shapes=scratch,
        compiler_params=pltpu.CompilerParams(
            dimension_semantics=("parallel", "parallel", "parallel"),
            vmem_limit_bytes=vmem_limit),
    )(x_pad, x_pad, w2, b2)

    if c_out_pad != C_out or T_out_pad != T_out:
        out_full = out_full[:, :C_out, :T_out]
    return out_full


# --------------------------------------------------------------------------
# Reference + tests
# --------------------------------------------------------------------------

def _reference(x, weight, bias, padding, dilation):
    out = jax.lax.conv_general_dilated(
        x, weight, window_strides=(1,), padding=[(padding, padding)],
        rhs_dilation=(dilation,), dimension_numbers=("NCH", "OIH", "NCH"),
        precision=jax.lax.Precision.HIGHEST)
    return out + bias[None, :, None]


def _run_case(key, B, C_in, C_out, T, K, dilation, base_t_tile, atol, name):
    kx, kw, kb = jax.random.split(key, 3)
    x = jax.random.normal(kx, (B, C_in, T), dtype=jnp.float32)
    bound = 1.0 / math.sqrt(C_in * K)
    w = jax.random.uniform(kw, (C_out, C_in, K), minval=-bound, maxval=bound,
                           dtype=jnp.float32)
    b = jax.random.uniform(kb, (C_out,), minval=-bound, maxval=bound,
                           dtype=jnp.float32)
    out = noncausal_conv1d(x, w, b, stride=1, padding=-1, dilation=dilation,
                           base_t_tile=base_t_tile)
    out = jax.block_until_ready(out)
    pad = (K - 1) // 2 * dilation
    ref = _reference(x, w, b, pad, dilation)
    assert out.shape == ref.shape, (name, out.shape, ref.shape)
    err = float(jnp.max(jnp.abs(out - ref)))
    assert err <= atol, (name, err)


if __name__ == "__main__":
    root = jax.random.PRNGKey(0)
    k1, k2, k3, k4 = jax.random.split(root, 4)

    # 1) module-default tiny config -> VPU broadcast-FMA path, single tile.
    _run_case(k1, B=2, C_in=4, C_out=6, T=16, K=5, dilation=1,
              base_t_tile=1024, atol=1e-4, name="vpu_tiny")

    # 2) VPU path, dilation + multi-tile (exercises cross-tile halo stitch).
    _run_case(k2, B=1, C_in=8, C_out=16, T=700, K=7, dilation=2,
              base_t_tile=256, atol=1e-4, name="vpu_multitile")

    # 3) im2col path (C_out*K*C_in > 4096, contraction < MXU width), multi-tile.
    _run_case(k3, B=1, C_in=24, C_out=40, T=700, K=5, dilation=2,
              base_t_tile=256, atol=2e-2, name="im2col_multitile")

    # 4) direct K-matmul-accumulate path (C_in fills MXU contraction), multi-tile.
    _run_case(k4, B=1, C_in=256, C_out=16, T=700, K=3, dilation=1,
              base_t_tile=256, atol=5e-2, name="direct_multitile")

    print("KERNEL_OK")
</pallas_src>

<mosaic_0001>
module attributes {stable_mosaic.version = 11 : i64} {
  func.func @_kernel_vpu(%arg0: i32, %arg1: i32, %arg2: i32, %arg3: memref<1x8x128xf32, #tpu.memory_space<vmem>>, %arg4: memref<1x8x128xf32, #tpu.memory_space<vmem>>, %arg5: memref<6x40xf32, #tpu.memory_space<vmem>>, %arg6: memref<6x1xf32, #tpu.memory_space<vmem>>, %arg7: memref<1x6x128xf32, #tpu.memory_space<vmem>>) attributes {dimension_semantics = [#tpu.dimension_semantics<parallel>, #tpu.dimension_semantics<parallel>, #tpu.dimension_semantics<parallel>], iteration_bounds = array<i64: 2, 1, 1>, scalar_prefetch = 0 : i64, scratch_operands = 0 : i64, tpu.core_type = #tpu.core_type<tc>, window_params = [{transform_indices = @transform_0, window_bounds = array<i64: 1, 8, 128>}, {transform_indices = @transform_1, window_bounds = array<i64: 1, 8, 128>}, {transform_indices = @transform_2, window_bounds = array<i64: 6, 40>}, {transform_indices = @transform_3, window_bounds = array<i64: 6, 1>}, {transform_indices = @transform_4, window_bounds = array<i64: 1, 6, 128>}]} {
    %c0 = arith.constant 0 : index
    %c0_0 = arith.constant 0 : index
    %c0_1 = arith.constant 0 : index
    %0 = vector.load %arg3[%c0, %c0_0, %c0_1] : memref<1x8x128xf32, #tpu.memory_space<vmem>>, vector<1x8x128xf32>
    %1 = vector.shape_cast %0 : vector<1x8x128xf32> to vector<8x128xf32>
    %c0_2 = arith.constant 0 : index
    %c0_3 = arith.constant 0 : index
    %c0_4 = arith.constant 0 : index
    %2 = vector.load %arg4[%c0_2, %c0_3, %c0_4] : memref<1x8x128xf32, #tpu.memory_space<vmem>>, vector<1x8x128xf32>
    %3 = vector.shape_cast %2 : vector<1x8x128xf32> to vector<8x128xf32>
    %cst = arith.constant 0.000000e+00 : f32
    %4 = vector.broadcast %cst : f32 to vector<6x128xf32>
    %c0_5 = arith.constant 0 : index
    %c0_6 = arith.constant 0 : index
    %5 = vector.load %arg5[%c0_5, %c0_6] : memref<6x40xf32, #tpu.memory_space<vmem>>, vector<6x1xf32>
    %6 = vector.extract_strided_slice %1 {offsets = [0, 0], sizes = [1, 128], strides = [1, 1]} : vector<8x128xf32> to vector<1x128xf32>
    %7 = vector.broadcast %5 : vector<6x1xf32> to vector<6x128xf32>
    %8 = vector.broadcast %6 : vector<1x128xf32> to vector<6x128xf32>
    %9 = arith.mulf %7, %8 : vector<6x128xf32>
    %10 = arith.addf %4, %9 : vector<6x128xf32>
    %c0_7 = arith.constant 0 : index
    %c1 = arith.constant 1 : index
    %11 = vector.load %arg5[%c0_7, %c1] : memref<6x40xf32, #tpu.memory_space<vmem>>, vector<6x1xf32>
    %12 = vector.extract_strided_slice %1 {offsets = [1, 0], sizes = [1, 128], strides = [1, 1]} : vector<8x128xf32> to vector<1x128xf32>
    %13 = vector.broadcast %11 : vector<6x1xf32> to vector<6x128xf32>
    %14 = vector.broadcast %12 : vector<1x128xf32> to vector<6x128xf32>
    %15 = arith.mulf %13, %14 : vector<6x128xf32>
    %16 = arith.addf %10, %15 : vector<6x128xf32>
    %c0_8 = arith.constant 0 : index
    %c2 = arith.constant 2 : index
    %17 = vector.load %arg5[%c0_8, %c2] : memref<6x40xf32, #tpu.memory_space<vmem>>, vector<6x1xf32>
    %18 = vector.extract_strided_slice %1 {offsets = [2, 0], sizes = [1, 128], strides = [1, 1]} : vector<8x128xf32> to vector<1x128xf32>
    %19 = vector.broadcast %17 : vector<6x1xf32> to vector<6x128xf32>
    %20 = vector.broadcast %18 : vector<1x128xf32> to vector<6x128xf32>
    %21 = arith.mulf %19, %20 : vector<6x128xf32>
    %22 = arith.addf %16, %21 : vector<6x128xf32>
    %c0_9 = arith.constant 0 : index
    %c3 = arith.constant 3 : index
    %23 = vector.load %arg5[%c0_9, %c3] : memref<6x40xf32, #tpu.memory_space<vmem>>, vector<6x1xf32>
    %24 = vector.extract_strided_slice %1 {offsets = [3, 0], sizes = [1, 128], strides = [1, 1]} : vector<8x128xf32> to vector<1x128xf32>
    %25 = vector.broadcast %23 : vector<6x1xf32> to vector<6x128xf32>
    %26 = vector.broadcast %24 : vector<1x128xf32> to vector<6x128xf32>
    %27 = arith.mulf %25, %26 : vector<6x128xf32>
    %28 = arith.addf %22, %27 : vector<6x128xf32>
    %29 = vector.extract_strided_slice %1 {offsets = [0, 1], sizes = [8, 127], strides = [1, 1]} : vector<8x128xf32> to vector<8x127xf32>
    %30 = vector.extract_strided_slice %3 {offsets = [0, 0], sizes = [8, 1], strides = [1, 1]} : vector<8x128xf32> to vector<8x1xf32>
    %31 = tpu.concatenate %29, %30 in 1 : vector<8x127xf32>, vector<8x1xf32> -> vector<8x128xf32>
    %c0_10 = arith.constant 0 : index
    %c8 = arith.constant 8 : index
    %32 = vector.load %arg5[%c0_10, %c8] : memref<6x40xf32, #tpu.memory_space<vmem>>, vector<6x1xf32>
    %33 = vector.extract_strided_slice %31 {offsets = [0, 0], sizes = [1, 128], strides = [1, 1]} : vector<8x128xf32> to vector<1x128xf32>
    %34 = vector.broadcast %32 : vector<6x1xf32> to vector<6x128xf32>
    %35 = vector.broadcast %33 : vector<1x128xf32> to vector<6x128xf32>
    %36 = arith.mulf %34, %35 : vector<6x128xf32>
    %37 = arith.addf %28, %36 : vector<6x128xf32>
    %c0_11 = arith.constant 0 : index
    %c9 = arith.constant 9 : index
    %38 = vector.load %arg5[%c0_11, %c9] : memref<6x40xf32, #tpu.memory_space<vmem>>, vector<6x1xf32>
    %39 = vector.extract_strided_slice %31 {offsets = [1, 0], sizes = [1, 128], strides = [1, 1]} : vector<8x128xf32> to vector<1x128xf32>
    %40 = vector.broadcast %38 : vector<6x1xf32> to vector<6x128xf32>
    %41 = vector.broadcast %39 : vector<1x128xf32> to vector<6x128xf32>
    %42 = arith.mulf %40, %41 : vector<6x128xf32>
    %43 = arith.addf %37, %42 : vector<6x128xf32>
    %c0_12 = arith.constant 0 : index
    %c10 = arith.constant 10 : index
    %44 = vector.load %arg5[%c0_12, %c10] : memref<6x40xf32, #tpu.memory_space<vmem>>, vector<6x1xf32>
    %45 = vector.extract_strided_slice %31 {offsets = [2, 0], sizes = [1, 128], strides = [1, 1]} : vector<8x128xf32> to vector<1x128xf32>
    %46 = vector.broadcast %44 : vector<6x1xf32> to vector<6x128xf32>
    %47 = vector.broadcast %45 : vector<1x128xf32> to vector<6x128xf32>
    %48 = arith.mulf %46, %47 : vector<6x128xf32>
    %49 = arith.addf %43, %48 : vector<6x128xf32>
    %c0_13 = arith.constant 0 : index
    %c11 = arith.constant 11 : index
    %50 = vector.load %arg5[%c0_13, %c11] : memref<6x40xf32, #tpu.memory_space<vmem>>, vector<6x1xf32>
    %51 = vector.extract_strided_slice %31 {offsets = [3, 0], sizes = [1, 128], strides = [1, 1]} : vector<8x128xf32> to vector<1x128xf32>
    %52 = vector.broadcast %50 : vector<6x1xf32> to vector<6x128xf32>
    %53 = vector.broadcast %51 : vector<1x128xf32> to vector<6x128xf32>
    %54 = arith.mulf %52, %53 : vector<6x128xf32>
    %55 = arith.addf %49, %54 : vector<6x128xf32>
    %56 = vector.extract_strided_slice %1 {offsets = [0, 2], sizes = [8, 126], strides = [1, 1]} : vector<8x128xf32> to vector<8x126xf32>
    %57 = vector.extract_strided_slice %3 {offsets = [0, 0], sizes = [8, 2], strides = [1, 1]} : vector<8x128xf32> to vector<8x2xf32>
    %58 = tpu.concatenate %56, %57 in 1 : vector<8x126xf32>, vector<8x2xf32> -> vector<8x128xf32>
    %c0_14 = arith.constant 0 : index
    %c16 = arith.constant 16 : index
    %59 = vector.load %arg5[%c0_14, %c16] : memref<6x40xf32, #tpu.memory_space<vmem>>, vector<6x1xf32>
    %60 = vector.extract_strided_slice %58 {offsets = [0, 0], sizes = [1, 128], strides = [1, 1]} : vector<8x128xf32> to vector<1x128xf32>
    %61 = vector.broadcast %59 : vector<6x1xf32> to vector<6x128xf32>
    %62 = vector.broadcast %60 : vector<1x128xf32> to vector<6x128xf32>
    %63 = arith.mulf %61, %62 : vector<6x128xf32>
    %64 = arith.addf %55, %63 : vector<6x128xf32>
    %c0_15 = arith.constant 0 : index
    %c17 = arith.constant 17 : index
    %65 = vector.load %arg5[%c0_15, %c17] : memref<6x40xf32, #tpu.memory_space<vmem>>, vector<6x1xf32>
    %66 = vector.extract_strided_slice %58 {offsets = [1, 0], sizes = [1, 128], strides = [1, 1]} : vector<8x128xf32> to vector<1x128xf32>
    %67 = vector.broadcast %65 : vector<6x1xf32> to vector<6x128xf32>
    %68 = vector.broadcast %66 : vector<1x128xf32> to vector<6x128xf32>
    %69 = arith.mulf %67, %68 : vector<6x128xf32>
    %70 = arith.addf %64, %69 : vector<6x128xf32>
    %c0_16 = arith.constant 0 : index
    %c18 = arith.constant 18 : index
    %71 = vector.load %arg5[%c0_16, %c18] : memref<6x40xf32, #tpu.memory_space<vmem>>, vector<6x1xf32>
    %72 = vector.extract_strided_slice %58 {offsets = [2, 0], sizes = [1, 128], strides = [1, 1]} : vector<8x128xf32> to vector<1x128xf32>
    %73 = vector.broadcast %71 : vector<6x1xf32> to vector<6x128xf32>
    %74 = vector.broadcast %72 : vector<1x128xf32> to vector<6x128xf32>
    %75 = arith.mulf %73, %74 : vector<6x128xf32>
    %76 = arith.addf %70, %75 : vector<6x128xf32>
    %c0_17 = arith.constant 0 : index
    %c19 = arith.constant 19 : index
    %77 = vector.load %arg5[%c0_17, %c19] : memref<6x40xf32, #tpu.memory_space<vmem>>, vector<6x1xf32>
    %78 = vector.extract_strided_slice %58 {offsets = [3, 0], sizes = [1, 128], strides = [1, 1]} : vector<8x128xf32> to vector<1x128xf32>
    %79 = vector.broadcast %77 : vector<6x1xf32> to vector<6x128xf32>
    %80 = vector.broadcast %78 : vector<1x128xf32> to vector<6x128xf32>
    %81 = arith.mulf %79, %80 : vector<6x128xf32>
    %82 = arith.addf %76, %81 : vector<6x128xf32>
    %83 = vector.extract_strided_slice %1 {offsets = [0, 3], sizes = [8, 125], strides = [1, 1]} : vector<8x128xf32> to vector<8x125xf32>
    %84 = vector.extract_strided_slice %3 {offsets = [0, 0], sizes = [8, 3], strides = [1, 1]} : vector<8x128xf32> to vector<8x3xf32>
    %85 = tpu.concatenate %83, %84 in 1 : vector<8x125xf32>, vector<8x3xf32> -> vector<8x128xf32>
    %c0_18 = arith.constant 0 : index
    %c24 = arith.constant 24 : index
    %86 = vector.load %arg5[%c0_18, %c24] : memref<6x40xf32, #tpu.memory_space<vmem>>, vector<6x1xf32>
    %87 = vector.extract_strided_slice %85 {offsets = [0, 0], sizes = [1, 128], strides = [1, 1]} : vector<8x128xf32> to vector<1x128xf32>
    %88 = vector.broadcast %86 : vector<6x1xf32> to vector<6x128xf32>
    %89 = vector.broadcast %87 : vector<1x128xf32> to vector<6x128xf32>
    %90 = arith.mulf %88, %89 : vector<6x128xf32>
    %91 = arith.addf %82, %90 : vector<6x128xf32>
    %c0_19 = arith.constant 0 : index
    %c25 = arith.constant 25 : index
    %92 = vector.load %arg5[%c0_19, %c25] : memref<6x40xf32, #tpu.memory_space<vmem>>, vector<6x1xf32>
    %93 = vector.extract_strided_slice %85 {offsets = [1, 0], sizes = [1, 128], strides = [1, 1]} : vector<8x128xf32> to vector<1x128xf32>
    %94 = vector.broadcast %92 : vector<6x1xf32> to vector<6x128xf32>
    %95 = vector.broadcast %93 : vector<1x128xf32> to vector<6x128xf32>
    %96 = arith.mulf %94, %95 : vector<6x128xf32>
    %97 = arith.addf %91, %96 : vector<6x128xf32>
    %c0_20 = arith.constant 0 : index
    %c26 = arith.constant 26 : index
    %98 = vector.load %arg5[%c0_20, %c26] : memref<6x40xf32, #tpu.memory_space<vmem>>, vector<6x1xf32>
    %99 = vector.extract_strided_slice %85 {offsets = [2, 0], sizes = [1, 128], strides = [1, 1]} : vector<8x128xf32> to vector<1x128xf32>
    %100 = vector.broadcast %98 : vector<6x1xf32> to vector<6x128xf32>
    %101 = vector.broadcast %99 : vector<1x128xf32> to vector<6x128xf32>
    %102 = arith.mulf %100, %101 : vector<6x128xf32>
    %103 = arith.addf %97, %102 : vector<6x128xf32>
    %c0_21 = arith.constant 0 : index
    %c27 = arith.constant 27 : index
    %104 = vector.load %arg5[%c0_21, %c27] : memref<6x40xf32, #tpu.memory_space<vmem>>, vector<6x1xf32>
    %105 = vector.extract_strided_slice %85 {offsets = [3, 0], sizes = [1, 128], strides = [1, 1]} : vector<8x128xf32> to vector<1x128xf32>
    %106 = vector.broadcast %104 : vector<6x1xf32> to vector<6x128xf32>
    %107 = vector.broadcast %105 : vector<1x128xf32> to vector<6x128xf32>
    %108 = arith.mulf %106, %107 : vector<6x128xf32>
    %109 = arith.addf %103, %108 : vector<6x128xf32>
    %110 = vector.extract_strided_slice %1 {offsets = [0, 4], sizes = [8, 124], strides = [1, 1]} : vector<8x128xf32> to vector<8x124xf32>
    %111 = vector.extract_strided_slice %3 {offsets = [0, 0], sizes = [8, 4], strides = [1, 1]} : vector<8x128xf32> to vector<8x4xf32>
    %112 = tpu.concatenate %110, %111 in 1 : vector<8x124xf32>, vector<8x4xf32> -> vector<8x128xf32>
    %c0_22 = arith.constant 0 : index
    %c32 = arith.constant 32 : index
    %113 = vector.load %arg5[%c0_22, %c32] : memref<6x40xf32, #tpu.memory_space<vmem>>, vector<6x1xf32>
    %114 = vector.extract_strided_slice %112 {offsets = [0, 0], sizes = [1, 128], strides = [1, 1]} : vector<8x128xf32> to vector<1x128xf32>
    %115 = vector.broadcast %113 : vector<6x1xf32> to vector<6x128xf32>
    %116 = vector.broadcast %114 : vector<1x128xf32> to vector<6x128xf32>
    %117 = arith.mulf %115, %116 : vector<6x128xf32>
    %118 = arith.addf %109, %117 : vector<6x128xf32>
    %c0_23 = arith.constant 0 : index
    %c33 = arith.constant 33 : index
    %119 = vector.load %arg5[%c0_23, %c33] : memref<6x40xf32, #tpu.memory_space<vmem>>, vector<6x1xf32>
    %120 = vector.extract_strided_slice %112 {offsets = [1, 0], sizes = [1, 128], strides = [1, 1]} : vector<8x128xf32> to vector<1x128xf32>
    %121 = vector.broadcast %119 : vector<6x1xf32> to vector<6x128xf32>
    %122 = vector.broadcast %120 : vector<1x128xf32> to vector<6x128xf32>
    %123 = arith.mulf %121, %122 : vector<6x128xf32>
    %124 = arith.addf %118, %123 : vector<6x128xf32>
    %c0_24 = arith.constant 0 : index
    %c34 = arith.constant 34 : index
    %125 = vector.load %arg5[%c0_24, %c34] : memref<6x40xf32, #tpu.memory_space<vmem>>, vector<6x1xf32>
    %126 = vector.extract_strided_slice %112 {offsets = [2, 0], sizes = [1, 128], strides = [1, 1]} : vector<8x128xf32> to vector<1x128xf32>
    %127 = vector.broadcast %125 : vector<6x1xf32> to vector<6x128xf32>
    %128 = vector.broadcast %126 : vector<1x128xf32> to vector<6x128xf32>
    %129 = arith.mulf %127, %128 : vector<6x128xf32>
    %130 = arith.addf %124, %129 : vector<6x128xf32>
    %c0_25 = arith.constant 0 : index
    %c35 = arith.constant 35 : index
    %131 = vector.load %arg5[%c0_25, %c35] : memref<6x40xf32, #tpu.memory_space<vmem>>, vector<6x1xf32>
    %132 = vector.extract_strided_slice %112 {offsets = [3, 0], sizes = [1, 128], strides = [1, 1]} : vector<8x128xf32> to vector<1x128xf32>
    %133 = vector.broadcast %131 : vector<6x1xf32> to vector<6x128xf32>
    %134 = vector.broadcast %132 : vector<1x128xf32> to vector<6x128xf32>
    %135 = arith.mulf %133, %134 : vector<6x128xf32>
    %136 = arith.addf %130, %135 : vector<6x128xf32>
    %c0_26 = arith.constant 0 : index
    %c0_27 = arith.constant 0 : index
    %137 = vector.load %arg6[%c0_26, %c0_27] : memref<6x1xf32, #tpu.memory_space<vmem>>, vector<6x1xf32>
    %138 = vector.broadcast %137 : vector<6x1xf32> to vector<6x128xf32>
    %139 = arith.addf %136, %138 : vector<6x128xf32>
    %140 = vector.shape_cast %139 : vector<6x128xf32> to vector<1x6x128xf32>
    %c0_28 = arith.constant 0 : index
    %c0_29 = arith.constant 0 : index
    %c0_30 = arith.constant 0 : index
    %141 = vector.load %arg7[%c0_28, %c0_29, %c0_30] : memref<1x6x128xf32, #tpu.memory_space<vmem>>, vector<1x6x128xf32>
    tpu.vector_store %arg7[%c0_28, %c0_29, %c0_30], %140 {strides = array<i32>} : memref<1x6x128xf32, #tpu.memory_space<vmem>>, vector<1x6x128xf32>,
    return
  }
  func.func @transform_0(%arg0: i32, %arg1: i32, %arg2: i32) -> (i32, i32, i32) {
    %c0_i32 = arith.constant 0 : i32
    %c0_i32_0 = arith.constant 0 : i32
    return %arg0, %c0_i32, %arg2 : i32, i32, i32
  }
  func.func @transform_1(%arg0: i32, %arg1: i32, %arg2: i32) -> (i32, i32, i32) {
    %c1_i32 = arith.constant 1 : i32
    %0 = arith.addi %arg2, %c1_i32 : i32
    %c1_i32_0 = arith.constant 1 : i32
    %1 = arith.muli %0, %c1_i32_0 : i32
    %c0_i32 = arith.constant 0 : i32
    %c0_i32_1 = arith.constant 0 : i32
    return %arg0, %c0_i32, %1 : i32, i32, i32
  }
  func.func @transform_2(%arg0: i32, %arg1: i32, %arg2: i32) -> (i32, i32) {
    %c0_i32 = arith.constant 0 : i32
    %c0_i32_0 = arith.constant 0 : i32
    return %arg1, %c0_i32 : i32, i32
  }
  func.func @transform_3(%arg0: i32, %arg1: i32, %arg2: i32) -> (i32, i32) {
    %c0_i32 = arith.constant 0 : i32
    %c0_i32_0 = arith.constant 0 : i32
    return %arg1, %c0_i32 : i32, i32
  }
  func.func @transform_4(%arg0: i32, %arg1: i32, %arg2: i32) -> (i32, i32, i32) {
    %c0_i32 = arith.constant 0 : i32
    return %arg0, %arg1, %arg2 : i32, i32, i32
  }
}

</mosaic_0001>

<llo_original>
// kernel: tpu_custom_call.1
$region0: #{tpu_custom_call.1}
  #allocation0 [shape = 'u32[]', space=smem, size = 0x4, offset = 0x4, fixed_abs, tag = 'smem constant byte address 0x4 - core index']
  #allocation1 [shape = 'u32[144,128]{1,0:T(1,128)}', space=vmem, size = 0x12000, scoped, tag = 'internal scratch']
  %s0 = inlined_call_operand.hbm [shape: f32[2,8,256], index: 0, kind: input, shape index: {}]
  %s1 = inlined_call_operand.hbm [shape: f32[2,8,256], index: 1, kind: input, shape index: {}]
  %s2 = inlined_call_operand.vmem [shape: f32[6,40], index: 2, kind: input, shape index: {}]
  %s3 = inlined_call_operand.vmem [shape: f32[6,1], index: 3, kind: input, shape index: {}]
  %s4 = inlined_call_operand.vmem [shape: f32[2,6,128], index: 4, kind: output, shape index: {}]
  %s5 = sld [smem:[#allocation0]]
  $region57: #{tpu_custom_call.1} parent=0
    _
  %s7 = ssub.s32 1, %s5
  %s8 = scalar_select 0, %s7, %s5
  $region1: #{tpu_custom_call.1} parent=0
    #allocation2 [shape = 'u8[8192]{0}', space=vmem, size = 0x2000, scoped, tag = 'input window, operand 0']
    #allocation3 [shape = 's32[2]{0}', space=sflag, size = 0x8, scoped, tag = 'scoped memory for tpu_custom_call.1']
    #allocation4 [shape = 'u8[8192]{0}', space=vmem, size = 0x2000, scoped, tag = 'input window, operand 1']
    #allocation5 [shape = 's32[2]{0}', space=sflag, size = 0x8, scoped, tag = 'scoped memory for tpu_custom_call.1']
    %9 = vsyncpa [#allocation3], 0
    %s10 = scalar_lea.sflag [#allocation3], 1
    %11 = vsyncpa %s10, 0
    %12 = vsyncpa [#allocation5], 0
    %s13 = scalar_lea.sflag [#allocation5], 1
    %14 = vsyncpa %s13, 0
    loop: start=0, step=1, limit=4
    $region2: #{tpu_custom_call.1} parent=1 // loop_pre_header
      _
    $region3: #{tpu_custom_call.1} parent=1 // loop_header
      %s16 = sphi 0, %s20
      %p17 = scmp.ge.s32.totalorder %s16, 4
      %s23 = sphi 0, %s42
      %s24 = sphi 0, %s38
      %s25 = sphi 0, %s34
      %s26 = sphi 0, %s23
      %s27 = sphi 0, %s24
      %s28 = sphi 0, %s25
      %s29 = sphi 0, %s26
      %s30 = sphi 0, %s27
      %s31 = sphi 0, %s28
      %s47 = sphi 0, %s49
      %s50 = sphi 0, %s47
      %s51 = sphi 0, %s50
      %s67 = sphi 0, %s51
      %s77 = sphi 0, %s79
      %s80 = sphi 0, %s77
      %s81 = sphi 0, %s80
      %s97 = sphi 0, %s81
      %s103 = sphi 0, %s105
      %s106 = sphi 0, %s103
      %s107 = sphi 0, %s106
      %s123 = sphi 0, %s107
      %s129 = sphi 0, %s131
      %s132 = sphi 0, %s129
      %s133 = sphi 0, %s132
      %s149 = sphi 0, %s133
      %s159 = sphi 0, %s161
      %s162 = sphi 0, %s159
      %s163 = sphi 0, %s162
      %s179 = sphi 0, %s163
    $region4: #{tpu_custom_call.1} parent=1 // loop_header_branch
      %19 = sbr.rel (%p17) target = $region8
    $region5: #{tpu_custom_call.1} parent=1 // loop_body
      %s21 = ssub.s32 %s16, 1
      %s22 = ssub.s32 %s16, 2
      %s32 = sadd.s32 1, %s25
      %p33 = scmp.ge.s32.totalorder %s32, 1
      %s34 = scalar_select %p33, 0, %s32
      %s35 = sadd.s32 1, %s24
      %s36 = scalar_select %p33, %s35, %s24
      %p37 = scmp.ge.s32.totalorder %s36, 1
      %s38 = scalar_select %p37, 0, %s36
      %s39 = sadd.s32 1, %s23
      %s40 = scalar_select %p37, %s39, %s23
      %p41 = scmp.ge.s32.totalorder %s40, 2
      %s42 = scalar_select %p41, 0, %s40
      %s43 = ssub.s32 %s23, %s42
      %s44 = ssub.s32 %s25, %s34
      %s45 = sor.u32 %s43, %s44
      %p46 = scmp.eq.s32.totalorder %s45, 0
      %s48 = sadd.s32 %s47, 1
      %s49 = scalar_select %p46, %s47, %s48
      %p52 = pneg %p46
      %p53 = scmp.eq.s32.totalorder %s16, 1
      %p54 = por %p52, %p53
      %p55 = scmp.ne.s32.totalorder %s47, %s50
      %p56 = scmp.eq.s32.totalorder %s16, 0
      %p57 = por %p55, %p56
      %p58 = scmp.ne.s32.totalorder %s47, %s50
      %p59 = scmp.eq.s32.totalorder %s21, 1
      %p60 = por %p58, %p59
      %p61 = scmp.ne.s32.totalorder %s50, %s51
      %p62 = scmp.eq.s32.totalorder %s21, 0
      %p63 = por %p61, %p62
      %p64 = scmp.ne.s32.totalorder %s50, %s51
      %p65 = scmp.eq.s32.totalorder %s22, 1
      %p66 = por %p64, %p65
      %p68 = scmp.ne.s32.totalorder %s51, %s67
      %p69 = scmp.eq.s32.totalorder %s22, 0
      %p70 = por %p68, %p69
      %s71 = sadd.s32 %s25, 1
      %s72 = sadd.s32 %s34, 1
      %s73 = ssub.s32 %s23, %s42
      %s74 = ssub.s32 %s71, %s72
      %s75 = sor.u32 %s73, %s74
      %p76 = scmp.eq.s32.totalorder %s75, 0
      %s78 = sadd.s32 %s77, 1
      %s79 = scalar_select %p76, %s77, %s78
      %p82 = pneg %p76
      %p83 = scmp.eq.s32.totalorder %s16, 1
      %p84 = por %p82, %p83
      %p85 = scmp.ne.s32.totalorder %s77, %s80
      %p86 = scmp.eq.s32.totalorder %s16, 0
      %p87 = por %p85, %p86
      %p88 = scmp.ne.s32.totalorder %s77, %s80
      %p89 = scmp.eq.s32.totalorder %s21, 1
      %p90 = por %p88, %p89
      %p91 = scmp.ne.s32.totalorder %s80, %s81
      %p92 = scmp.eq.s32.totalorder %s21, 0
      %p93 = por %p91, %p92
      %p94 = scmp.ne.s32.totalorder %s80, %s81
      %p95 = scmp.eq.s32.totalorder %s22, 1
      %p96 = por %p94, %p95
      %p98 = scmp.ne.s32.totalorder %s81, %s97
      %p99 = scmp.eq.s32.totalorder %s22, 0
      %p100 = por %p98, %p99
      %s101 = ssub.s32 %s24, %s38
      %p102 = scmp.eq.s32.totalorder %s101, 0
      %s104 = sadd.s32 %s103, 1
      %s105 = scalar_select %p102, %s103, %s104
      %p108 = pneg %p102
      %p109 = scmp.eq.s32.totalorder %s16, 1
      %p110 = por %p108, %p109
      %p111 = scmp.ne.s32.totalorder %s103, %s106
      %p112 = scmp.eq.s32.totalorder %s16, 0
      %p113 = por %p111, %p112
      %p114 = scmp.ne.s32.totalorder %s103, %s106
      %p115 = scmp.eq.s32.totalorder %s21, 1
      %p116 = por %p114, %p115
      %p117 = scmp.ne.s32.totalorder %s106, %s107
      %p118 = scmp.eq.s32.totalorder %s21, 0
      %p119 = por %p117, %p118
      %p120 = scmp.ne.s32.totalorder %s106, %s107
      %p121 = scmp.eq.s32.totalorder %s22, 1
      %p122 = por %p120, %p121
      %p124 = scmp.ne.s32.totalorder %s107, %s123
      %p125 = scmp.eq.s32.totalorder %s22, 0
      %p126 = por %p124, %p125
      %s127 = ssub.s32 %s24, %s38
      %p128 = scmp.eq.s32.totalorder %s127, 0
      %s130 = sadd.s32 %s129, 1
      %s131 = scalar_select %p128, %s129, %s130
      %p134 = pneg %p128
      %p135 = scmp.eq.s32.totalorder %s16, 1
      %p136 = por %p134, %p135
      %p137 = scmp.ne.s32.totalorder %s129, %s132
      %p138 = scmp.eq.s32.totalorder %s16, 0
      %p139 = por %p137, %p138
      %p140 = scmp.ne.s32.totalorder %s129, %s132
      %p141 = scmp.eq.s32.totalorder %s21, 1
      %p142 = por %p140, %p141
      %p143 = scmp.ne.s32.totalorder %s132, %s133
      %p144 = scmp.eq.s32.totalorder %s21, 0
      %p145 = por %p143, %p144
      %p146 = scmp.ne.s32.totalorder %s132, %s133
      %p147 = scmp.eq.s32.totalorder %s22, 1
      %p148 = por %p146, %p147
      %p150 = scmp.ne.s32.totalorder %s133, %s149
      %p151 = scmp.eq.s32.totalorder %s22, 0
      %p152 = por %p150, %p151
      %s153 = ssub.s32 %s23, %s42
      %s154 = ssub.s32 %s24, %s38
      %s155 = sor.u32 %s153, %s154
      %s156 = ssub.s32 %s25, %s34
      %s157 = sor.u32 %s155, %s156
      %p158 = scmp.eq.s32.totalorder %s157, 0
      %s160 = sadd.s32 %s159, 1
      %s161 = scalar_select %p158, %s159, %s160
      %p164 = pneg %p158
      %p165 = scmp.eq.s32.totalorder %s16, 1
      %p166 = por %p164, %p165
      %p167 = scmp.ne.s32.totalorder %s159, %s162
      %p168 = scmp.eq.s32.totalorder %s16, 0
      %p169 = por %p167, %p168
      %p170 = scmp.ne.s32.totalorder %s159, %s162
      %p171 = scmp.eq.s32.totalorder %s21, 1
      %p172 = por %p170, %p171
      %p173 = scmp.ne.s32.totalorder %s162, %s163
      %p174 = scmp.eq.s32.totalorder %s21, 0
      %p175 = por %p173, %p174
      %p176 = scmp.ne.s32.totalorder %s162, %s163
      %p177 = scmp.eq.s32.totalorder %s22, 1
      %p178 = por %p176, %p177
      %p180 = scmp.ne.s32.totalorder %s163, %s179
      %p181 = scmp.eq.s32.totalorder %s22, 0
      %p182 = por %p180, %p181
      %p183 = scmp.le.s32.totalorder 1, %s16
      %p184 = scmp.lt.s32.totalorder %s16, 3
      %p185 = pnand %p183, %p184
      %p186 = pneg %p185
      // Predicated region
      $region9: #{tpu_custom_call.1} parent=5 // pred_check
        _
      $region10: #{tpu_custom_call.1} parent=5 // pred_check_branch
        %188 = sbr.rel (%p185) target = $region12
      $region11: #{tpu_custom_call.1} parent=5 // pred_region
        %s189 = ssub.s32 %s16, 1
        // Predicated region
        $region13: #{tpu_custom_call.1} parent=11 // pred_check
          %p190 = pneg %p119
        $region14: #{tpu_custom_call.1} parent=11 // pred_check_branch
          %192 = sbr.rel (%p190) target = $region16
        $region15: #{tpu_custom_call.1} parent=11 // pred_region
          %p193 = scmp.lt.s32.totalorder %s27, 0
          %s194 = scalar_select %p193, %s27, 0
          %s195 = smul.addr %s194, 8
          %s196 = scalar_lea.vmem %s2, %s195
        $region16: #{tpu_custom_call.1} parent=11 // pred_fallthru
          _
        // Predicated region
        $region17: #{tpu_custom_call.1} parent=11 // pred_check
          %p197 = pneg %p145
        $region18: #{tpu_custom_call.1} parent=11 // pred_check_branch
          %199 = sbr.rel (%p197) target = $region20
        $region19: #{tpu_custom_call.1} parent=11 // pred_region
          %p200 = scmp.lt.s32.totalorder %s27, 0
          %s201 = scalar_select %p200, %s27, 0
          %s202 = smul.addr %s201, 8
          %s203 = scalar_lea.vmem %s3, %s202
        $region20: #{tpu_custom_call.1} parent=11 // pred_fallthru
          _
      $region12: #{tpu_custom_call.1} parent=5 // pred_fallthru
        _
      %p204 = scmp.lt.s32.totalorder %s16, 2
      // Predicated region
      $region21: #{tpu_custom_call.1} parent=5 // pred_check
        %p205 = pneg %p204
      $region22: #{tpu_custom_call.1} parent=5 // pred_check_branch
        %207 = sbr.rel (%p205) target = $region24
      $region23: #{tpu_custom_call.1} parent=5 // pred_region
        // Predicated region
        $region25: #{tpu_custom_call.1} parent=23 // pred_check
          %p208 = pneg %p57
        $region26: #{tpu_custom_call.1} parent=23 // pred_check_branch
          %210 = sbr.rel (%p208) target = $region28
        $region27: #{tpu_custom_call.1} parent=23 // pred_region
          %s211 = sand.u32 %s47, 1
          %s212 = scalar_lea.sflag [#allocation3], %s211
          %s213 = sand.u32 %s47, 1
          %s214 = smul.addr %s213, 8
          %s215 = scalar_lea.vmem [#allocation2], %s214
          %s217 = ssub.s32 128, 128
          %218 = vsyncadd %s212, %s217
          %s219 = smul.addr %s23, 2
          %s220 = sadd.s32 %s25, %s219
          %s221 = smul.addr %s220, 128
          %s222 = scalar_lea.hbm %s0, %s221
          %s224 = sshll.u32 %s215, 4
          %s225 = int_to_ptr.vmem [resolvable:$true] %s224
          %227 = dma.hbm_to_vmem [thread:$0]  %s222, 128, %s225, %s212
        $region28: #{tpu_custom_call.1} parent=23 // pred_fallthru
          _
        // Predicated region
        $region29: #{tpu_custom_call.1} parent=23 // pred_check
          %p228 = pneg %p87
        $region30: #{tpu_custom_call.1} parent=23 // pred_check_branch
          %230 = sbr.rel (%p228) target = $region32
        $region31: #{tpu_custom_call.1} parent=23 // pred_region
          %s231 = sand.u32 %s77, 1
          %s232 = scalar_lea.sflag [#allocation5], %s231
          %s233 = sand.u32 %s77, 1
          %s234 = smul.addr %s233, 8
          %s235 = scalar_lea.vmem [#allocation4], %s234
          %s236 = sadd.s32 %s25, 1
          %s238 = ssub.s32 128, 128
          %239 = vsyncadd %s232, %s238
          %s240 = smul.addr %s23, 2
          %s241 = sadd.s32 %s236, %s240
          %s242 = smul.addr %s241, 128
          %s243 = scalar_lea.hbm %s1, %s242
          %s245 = sshll.u32 %s235, 4
          %s246 = int_to_ptr.vmem [resolvable:$true] %s245
          %248 = dma.hbm_to_vmem [thread:$0]  %s243, 128, %s246, %s232
        $region32: #{tpu_custom_call.1} parent=23 // pred_fallthru
          _
      $region24: #{tpu_custom_call.1} parent=5 // pred_fallthru
        _
      %p249 = scmp.le.s32.totalorder 1, %s16
      %p250 = scmp.lt.s32.totalorder %s16, 3
      %p251 = pnand %p249, %p250
      %p252 = pneg %p251
      // Predicated region
      $region33: #{tpu_custom_call.1} parent=5 // pred_check
        _
      $region34: #{tpu_custom_call.1} parent=5 // pred_check_branch
        %254 = sbr.rel (%p251) target = $region36
      $region35: #{tpu_custom_call.1} parent=5 // pred_region
        %s255 = ssub.s32 %s16, 1
        %s256 = sand.u32 %s50, 1
        %s257 = scalar_lea.sflag [#allocation3], %s256
        %s258 = sand.u32 %s50, 1
        %s259 = smul.addr %s258, 8
        %s260 = scalar_lea.vmem [#allocation2], %s259
        // Predicated region
        $region37: #{tpu_custom_call.1} parent=35 // pred_check
          %p261 = pneg %p63
        $region38: #{tpu_custom_call.1} parent=35 // pred_check_branch
          %263 = sbr.rel (%p261) target = $region40
        $region39: #{tpu_custom_call.1} parent=35 // pred_region
          %264 = dma.done %s257, 128
        $region40: #{tpu_custom_call.1} parent=35 // pred_fallthru
          _
        %s265 = sand.u32 %s80, 1
        %s266 = scalar_lea.sflag [#allocation5], %s265
        %s267 = sand.u32 %s80, 1
        %s268 = smul.addr %s267, 8
        %s269 = scalar_lea.vmem [#allocation4], %s268
        // Predicated region
        $region41: #{tpu_custom_call.1} parent=35 // pred_check
          %p270 = pneg %p93
        $region42: #{tpu_custom_call.1} parent=35 // pred_check_branch
          %272 = sbr.rel (%p270) target = $region44
        $region43: #{tpu_custom_call.1} parent=35 // pred_region
          %273 = dma.done %s266, 128
        $region44: #{tpu_custom_call.1} parent=35 // pred_fallthru
          _
        %s274 = sand.u32 %s50, 1
        %s275 = scalar_lea.sflag [#allocation3], %s274
        %s276 = sand.u32 %s50, 1
        %s277 = smul.addr %s276, 8
        %s278 = scalar_lea.vmem [#allocation2], %s277
        %p279 = pneg %p63
        %p280 = pneg %p60
        %s281 = sand.u32 %s80, 1
        %s282 = scalar_lea.sflag [#allocation5], %s281
        %s283 = sand.u32 %s80, 1
        %s284 = smul.addr %s283, 8
        %s285 = scalar_lea.vmem [#allocation4], %s284
        %p286 = pneg %p93
        %p287 = pneg %p90
        %p288 = scmp.lt.s32.totalorder %s27, 0
        %s289 = scalar_select %p288, %s27, 0
        %s290 = smul.addr %s289, 8
        %s291 = scalar_lea.vmem %s2, %s290
        %p292 = pneg %p119
        %p293 = pneg %p116
        %p294 = scmp.lt.s32.totalorder %s27, 0
        %s295 = scalar_select %p294, %s27, 0
        %s296 = smul.addr %s295, 8
        %s297 = scalar_lea.vmem %s3, %s296
        %p298 = pneg %p145
        %p299 = pneg %p142
        %p300 = pneg %p175
        %p301 = pneg %p172
        %p302 = scmp.lt.s32.totalorder %s26, 1
        %s303 = scalar_select %p302, %s26, 1
        %p304 = scmp.lt.s32.totalorder %s27, 0
        %s305 = scalar_select %p304, %s27, 0
        %p306 = scmp.lt.s32.totalorder %s28, 0
        %s307 = scalar_select %p306, %s28, 0
        %s308 = sadd.s32 %s307, %s305
        %s309 = sadd.s32 %s308, %s303
        %s310 = smul.addr %s309, 8
        %s311 = scalar_lea.vmem %s4, %s310
        %s312 = sadd.s32 %s28, 1
        %p313 = scmp.lt.s32.totalorder %s27, 0
        %s314 = scalar_select %p313, %s27, 0
        %s315 = smul.addr %s314, 8
        %s316 = scalar_lea.vmem %s2, %s315
        %p317 = scmp.lt.s32.totalorder %s27, 0
        %s318 = scalar_select %p317, %s27, 0
        %s319 = smul.addr %s318, 8
        %s320 = scalar_lea.vmem %s3, %s319
        %p321 = scmp.lt.s32.totalorder %s26, 1
        %s322 = scalar_select %p321, %s26, 1
        %p323 = scmp.lt.s32.totalorder %s27, 0
        %s324 = scalar_select %p323, %s27, 0
        %p325 = scmp.lt.s32.totalorder %s28, 0
        %s326 = scalar_select %p325, %s28, 0
        %s327 = sadd.s32 %s326, %s324
        %s328 = sadd.s32 %s327, %s322
        %s329 = smul.addr %s328, 8
        %s330 = scalar_lea.vmem %s4, %s329
        %v331 = vld [vmem:[%s260] sm:$0xff]
        %v332 = vld [vmem:[%s269] sm:$0xff]
        %v333 = vld [vmem:[%s316] sm:$0x3f]
        %335 = vset.pattern.permute.xlu0 0
        %336 = vperm.xlu0 %335, %v333
        %v337 = vpop.permute.xlu0 %336
        %v339 = vlaneseq
        %v340 = vshrl.u32 %v339, 7
        %v341 = vsub.s32 0, %v340
        %v342 = vrot.slane %v331, %v341
        %v343 = vmul.f32 %v337, %v342
        %v344 = vadd.f32 %v343, 0.0
        %345 = vset.pattern.permute.xlu0 1
        %346 = vperm.xlu0 %345, %v333
        %v347 = vpop.permute.xlu0 %346
        %v349 = vlaneseq
        %v350 = vshrl.u32 %v349, 7
        %v351 = vsub.s32 1, %v350
        %v352 = vrot.slane %v331, %v351
        %v353 = vmul.f32 %v347, %v352
        %v354 = vadd.f32 %v344, %v353
        %355 = vset.pattern.permute.xlu0 2
        %356 = vperm.xlu0 %355, %v333
        %v357 = vpop.permute.xlu0 %356
        %v359 = vlaneseq
        %v360 = vshrl.u32 %v359, 7
        %v361 = vsub.s32 2, %v360
        %v362 = vrot.slane %v331, %v361
        %v363 = vmul.f32 %v357, %v362
        %v364 = vadd.f32 %v354, %v363
        %365 = vset.pattern.permute.xlu0 3
        %366 = vperm.xlu0 %365, %v333
        %v367 = vpop.permute.xlu0 %366
        %v369 = vlaneseq
        %v370 = vshrl.u32 %v369, 7
        %v371 = vsub.s32 3, %v370
        %v372 = vrot.slane %v331, %v371
        %v373 = vmul.f32 %v367, %v372
        %v374 = vadd.f32 %v364, %v373
        %376 = vrot.lane.b32.xlu0 %v331, 127
        %v377 = vpop.permute.xlu0 %376
        %380 = vrot.lane.b32.xlu0 %v332, 127
        %v381 = vpop.permute.xlu0 %380
        %vm383 = vcmask 1039360
        %v384 = vsel %vm383, %v377, %v381
        %385 = vset.pattern.permute.xlu0 8
        %386 = vperm.xlu0 %385, %v333
        %v387 = vpop.permute.xlu0 %386
        %v389 = vlaneseq
        %v390 = vshrl.u32 %v389, 7
        %v391 = vsub.s32 0, %v390
        %v392 = vrot.slane %v384, %v391
        %v393 = vmul.f32 %v387, %v392
        %v394 = vadd.f32 %v374, %v393
        %395 = vset.pattern.permute.xlu0 9
        %396 = vperm.xlu0 %395, %v333
        %v397 = vpop.permute.xlu0 %396
        %v399 = vlaneseq
        %v400 = vshrl.u32 %v399, 7
        %v401 = vsub.s32 1, %v400
        %v402 = vrot.slane %v384, %v401
        %v403 = vmul.f32 %v397, %v402
        %v404 = vadd.f32 %v394, %v403
        %405 = vset.pattern.permute.xlu0 10
        %406 = vperm.xlu0 %405, %v333
        %v407 = vpop.permute.xlu0 %406
        %v409 = vlaneseq
        %v410 = vshrl.u32 %v409, 7
        %v411 = vsub.s32 2, %v410
        %v412 = vrot.slane %v384, %v411
        %v413 = vmul.f32 %v407, %v412
        %v414 = vadd.f32 %v404, %v413
        %415 = vset.pattern.permute.xlu0 11
        %416 = vperm.xlu0 %415, %v333
        %v417 = vpop.permute.xlu0 %416
        %v419 = vlaneseq
        %v420 = vshrl.u32 %v419, 7
        %v421 = vsub.s32 3, %v420
        %v422 = vrot.slane %v384, %v421
        %v423 = vmul.f32 %v417, %v422
        %v424 = vadd.f32 %v414, %v423
        %425 = vrot.lane.b32.xlu0 %v331, 126
        %v426 = vpop.permute.xlu0 %425
        %428 = vrot.lane.b32.xlu0 %v332, 126
        %v429 = vpop.permute.xlu0 %428
        %vm431 = vcmask 1031168
        %v432 = vsel %vm431, %v426, %v429
        %433 = vset.pattern.permute.xlu0 16
        %434 = vperm.xlu0 %433, %v333
        %v435 = vpop.permute.xlu0 %434
        %v437 = vlaneseq
        %v438 = vshrl.u32 %v437, 7
        %v439 = vsub.s32 0, %v438
        %v440 = vrot.slane %v432, %v439
        %v441 = vmul.f32 %v435, %v440
        %v442 = vadd.f32 %v424, %v441
        %443 = vset.pattern.permute.xlu0 17
        %444 = vperm.xlu0 %443, %v333
        %v445 = vpop.permute.xlu0 %444
        %v447 = vlaneseq
        %v448 = vshrl.u32 %v447, 7
        %v449 = vsub.s32 1, %v448
        %v450 = vrot.slane %v432, %v449
        %v451 = vmul.f32 %v445, %v450
        %v452 = vadd.f32 %v442, %v451
        %453 = vset.pattern.permute.xlu0 18
        %454 = vperm.xlu0 %453, %v333
        %v455 = vpop.permute.xlu0 %454
        %v457 = vlaneseq
        %v458 = vshrl.u32 %v457, 7
        %v459 = vsub.s32 2, %v458
        %v460 = vrot.slane %v432, %v459
        %v461 = vmul.f32 %v455, %v460
        %v462 = vadd.f32 %v452, %v461
        %463 = vset.pattern.permute.xlu0 19
        %464 = vperm.xlu0 %463, %v333
        %v465 = vpop.permute.xlu0 %464
        %v467 = vlaneseq
        %v468 = vshrl.u32 %v467, 7
        %v469 = vsub.s32 3, %v468
        %v470 = vrot.slane %v432, %v469
        %v471 = vmul.f32 %v465, %v470
        %v472 = vadd.f32 %v462, %v471
        %473 = vrot.lane.b32.xlu0 %v331, 125
        %v474 = vpop.permute.xlu0 %473
        %476 = vrot.lane.b32.xlu0 %v332, 125
        %v477 = vpop.permute.xlu0 %476
        %vm479 = vcmask 1022976
        %v480 = vsel %vm479, %v474, %v477
        %481 = vset.pattern.permute.xlu0 24
        %482 = vperm.xlu0 %481, %v333
        %v483 = vpop.permute.xlu0 %482
        %v485 = vlaneseq
        %v486 = vshrl.u32 %v485, 7
        %v487 = vsub.s32 0, %v486
        %v488 = vrot.slane %v480, %v487
        %v489 = vmul.f32 %v483, %v488
        %v490 = vadd.f32 %v472, %v489
        %491 = vset.pattern.permute.xlu0 25
        %492 = vperm.xlu0 %491, %v333
        %v493 = vpop.permute.xlu0 %492
        %v495 = vlaneseq
        %v496 = vshrl.u32 %v495, 7
        %v497 = vsub.s32 1, %v496
        %v498 = vrot.slane %v480, %v497
        %v499 = vmul.f32 %v493, %v498
        %v500 = vadd.f32 %v490, %v499
        %501 = vset.pattern.permute.xlu0 26
        %502 = vperm.xlu0 %501, %v333
        %v503 = vpop.permute.xlu0 %502
        %v505 = vlaneseq
        %v506 = vshrl.u32 %v505, 7
        %v507 = vsub.s32 2, %v506
        %v508 = vrot.slane %v480, %v507
        %v509 = vmul.f32 %v503, %v508
        %v510 = vadd.f32 %v500, %v509
        %511 = vset.pattern.permute.xlu0 27
        %512 = vperm.xlu0 %511, %v333
        %v513 = vpop.permute.xlu0 %512
        %v515 = vlaneseq
        %v516 = vshrl.u32 %v515, 7
        %v517 = vsub.s32 3, %v516
        %v518 = vrot.slane %v480, %v517
        %v519 = vmul.f32 %v513, %v518
        %v520 = vadd.f32 %v510, %v519
        %521 = vrot.lane.b32.xlu0 %v331, 124
        %v522 = vpop.permute.xlu0 %521
        %524 = vrot.lane.b32.xlu0 %v332, 124
        %v525 = vpop.permute.xlu0 %524
        %vm527 = vcmask 1014784
        %v528 = vsel %vm527, %v522, %v525
        %529 = vset.pattern.permute.xlu0 32
        %530 = vperm.xlu0 %529, %v333
        %v531 = vpop.permute.xlu0 %530
        %v533 = vlaneseq
        %v534 = vshrl.u32 %v533, 7
        %v535 = vsub.s32 0, %v534
        %v536 = vrot.slane %v528, %v535
        %v537 = vmul.f32 %v531, %v536
        %v538 = vadd.f32 %v520, %v537
        %539 = vset.pattern.permute.xlu0 33
        %540 = vperm.xlu0 %539, %v333
        %v541 = vpop.permute.xlu0 %540
        %v543 = vlaneseq
        %v544 = vshrl.u32 %v543, 7
        %v545 = vsub.s32 1, %v544
        %v546 = vrot.slane %v528, %v545
        %v547 = vmul.f32 %v541, %v546
        %v548 = vadd.f32 %v538, %v547
        %549 = vset.pattern.permute.xlu0 34
        %550 = vperm.xlu0 %549, %v333
        %v551 = vpop.permute.xlu0 %550
        %v553 = vlaneseq
        %v554 = vshrl.u32 %v553, 7
        %v555 = vsub.s32 2, %v554
        %v556 = vrot.slane %v528, %v555
        %v557 = vmul.f32 %v551, %v556
        %v558 = vadd.f32 %v548, %v557
        %559 = vset.pattern.permute.xlu0 35
        %560 = vperm.xlu0 %559, %v333
        %v561 = vpop.permute.xlu0 %560
        %v563 = vlaneseq
        %v564 = vshrl.u32 %v563, 7
        %v565 = vsub.s32 3, %v564
        %v566 = vrot.slane %v528, %v565
        %v567 = vmul.f32 %v561, %v566
        %v568 = vadd.f32 %v558, %v567
        %v569 = vld [vmem:[%s320] sm:$0x3f]
        %571 = vset.pattern.permute.xlu0 0
        %572 = vperm.xlu0 %571, %v569
        %v573 = vpop.permute.xlu0 %572
        %v575 = vadd.f32 %v568, %v573
        %576 = vst [vmem:[%s330] sm:$0x3f] %v575
        %p577 = scmp.lt.s32.totalorder %s26, 1
        %s578 = scalar_select %p577, %s26, 1
        %p579 = scmp.lt.s32.totalorder %s27, 0
        %s580 = scalar_select %p579, %s27, 0
        %p581 = scmp.lt.s32.totalorder %s28, 0
        %s582 = scalar_select %p581, %s28, 0
        %s583 = sadd.s32 %s582, %s580
        %s584 = sadd.s32 %s583, %s578
        %s585 = smul.addr %s584, 8
        %s586 = scalar_lea.vmem %s4, %s585
        // Predicated region
        $region45: #{tpu_custom_call.1} parent=35 // pred_check
          %p587 = pneg %p172
        $region46: #{tpu_custom_call.1} parent=35 // pred_check_branch
          %589 = sbr.rel (%p587) target = $region48
        $region47: #{tpu_custom_call.1} parent=35 // pred_region
          _
        $region48: #{tpu_custom_call.1} parent=35 // pred_fallthru
          _
      $region36: #{tpu_custom_call.1} parent=5 // pred_fallthru
        _
      %p590 = scmp.le.s32.totalorder 2, %s16
      // Predicated region
      $region49: #{tpu_custom_call.1} parent=5 // pred_check
        %p591 = pneg %p590
      $region50: #{tpu_custom_call.1} parent=5 // pred_check_branch
        %593 = sbr.rel (%p591) target = $region52
      $region51: #{tpu_custom_call.1} parent=5 // pred_region
        %s594 = ssub.s32 %s16, 2
        // Predicated region
        $region53: #{tpu_custom_call.1} parent=51 // pred_check
          %p595 = pneg %p178
        $region54: #{tpu_custom_call.1} parent=51 // pred_check_branch
          %597 = sbr.rel (%p595) target = $region56
        $region55: #{tpu_custom_call.1} parent=51 // pred_region
          %p598 = scmp.lt.s32.totalorder %s29, 1
          %s599 = scalar_select %p598, %s29, 1
          %p600 = scmp.lt.s32.totalorder %s30, 0
          %s601 = scalar_select %p600, %s30, 0
          %p602 = scmp.lt.s32.totalorder %s31, 0
          %s603 = scalar_select %p602, %s31, 0
          %s604 = sadd.s32 %s603, %s601
          %s605 = sadd.s32 %s604, %s599
          %s606 = smul.addr %s605, 8
          %s607 = scalar_lea.vmem %s4, %s606
        $region56: #{tpu_custom_call.1} parent=51 // pred_fallthru
          _
      $region52: #{tpu_custom_call.1} parent=5 // pred_fallthru
        _
    $region6: #{tpu_custom_call.1} parent=1 // loop_footer
      %s20 = sadd.s32 1, %s16
    $region7: #{tpu_custom_call.1} parent=1 // loop_footer_branch
      %15 = sbr.rel target = $region3
    $region8: #{tpu_custom_call.1} parent=1 // loop_exit
      _
    %608 = vsyncpa [#allocation3], 1
    %s609 = scalar_lea.sflag [#allocation3], 1
    %610 = vsyncpa %s609, 1
    %611 = vsyncpa [#allocation5], 1
    %s612 = scalar_lea.sflag [#allocation5], 1
    %613 = vsyncpa %s612, 1

</llo_original>
